<compile_context>
chip_gen: v6e
topology: v6e:2x2x1
jax: 0.10.0
libtpu: 0.0.40
codegen_flags: <defaults>
</compile_context>

<pallas_src>
import functools

import jax
import jax.numpy as jnp
from jax.experimental import pallas as pl
from jax.experimental.pallas import tpu as pltpu


def _round_up(x, m):
    return (x + m - 1) // m * m


def _nbytes(a):
    return a.size * jnp.dtype(a.dtype).itemsize


def compute_if_kernel(sid_ref, qid_ref, q_ref, table_ref, disc_ref, out_ref,
                      *, n_students):
    """Fused gather + interaction + K-reduction + sigmoid for one batch tile.

    sid_ref/qid_ref: (tile_b, 1) int32       q_ref: (tile_b, K)
    table_ref: (S+Q, K) f32 = [sigmoid(student_emb); -sigmoid(difficulty)]
    disc_ref:  (1, S+Q) f32 = [0]*S ++ sigmoid(discrimination)
    out_ref:   (1, tile_b) f32
    """
    n_rows = table_ref.shape[0]                       # S + Q
    k = table_ref.shape[1]
    tb = q_ref.shape[0]

    sid = sid_ref[...]                                # (tb, 1) int32
    qid = qid_ref[...] + n_students                   # (tb, 1) int32, offset into T

    # Combined "two-hot" selector: +1 at the student row, +1 at the (negated
    # difficulty) question row of the stacked table.  Rows never collide, so the
    # entries are exactly 0/1.
    col = jax.lax.broadcasted_iota(jnp.int32, (tb, n_rows), 1)
    sel = (col == sid).astype(jnp.float32) + (col == qid).astype(jnp.float32)

    # In-kernel embedding gather on the (otherwise idle) MXU:
    #   d[b, :] = sigmoid(P)[sid[b], :] - sigmoid(D)[question[b], :]
    d = jnp.dot(sel, table_ref[...], preferred_element_type=jnp.float32)   # (tb, K)

    p = d * q_ref[...].astype(jnp.float32)                                 # (tb, K)

    # Row-sum over K, landing directly in the lane-dense (1, tb) layout.
    ones = jnp.ones((1, k), jnp.float32)
    row = jax.lax.dot_general(ones, p, (((1,), (1,)), ((), ())),
                              preferred_element_type=jnp.float32)          # (1, tb)

    # Discrimination gather, also lane-dense: the student half of disc_ref is zero,
    # so contracting against the two-hot selector picks sigmoid(A)[question[b]].
    disc = jax.lax.dot_general(disc_ref[...], sel, (((1,), (1,)), ((), ())),
                               preferred_element_type=jnp.float32)         # (1, tb)

    out_ref[...] = jax.nn.sigmoid(disc * row)


def compute_if_forward(student_emb_w, difficulty_w, discrimination_w,
                       student_id, question, q_matrix_line, *, block_b=8192):
    S, K = student_emb_w.shape
    Q = difficulty_w.shape[0]
    B = student_id.shape[0]

    # Hoist the sigmoids onto the (tiny) tables -- sigmoid commutes with a row
    # gather -- and stack them so a single MXU gather produces prof - diff directly.
    prof_tab = jax.nn.sigmoid(student_emb_w.astype(jnp.float32))            # (S, K)
    diff_tab = jax.nn.sigmoid(difficulty_w.astype(jnp.float32))             # (Q, K)
    table = jnp.concatenate([prof_tab, -diff_tab], axis=0)                  # (S+Q, K)
    disc_row = jnp.concatenate(
        [jnp.zeros((1, S), jnp.float32),
         jax.nn.sigmoid(discrimination_w.astype(jnp.float32)).reshape(1, Q)],
        axis=1)                                                              # (1, S+Q)

    # Batch tiling: big tiles amortize the ~0.35us/step pipeline overhead, but keep
    # >= 2 grid steps when the batch allows so v7x's two TensorCores both get work.
    b128 = _round_up(B, 128)
    tile_b = min(_round_up(block_b, 128), b128)
    if tile_b == b128 and b128 >= 256:
        tile_b = _round_up(b128 // 2, 128)
    B_pad = _round_up(B, tile_b)
    pad = B_pad - B

    sid = student_id.astype(jnp.int32).reshape(B, 1)
    qid = question.astype(jnp.int32).reshape(B, 1)
    q = q_matrix_line
    if pad:
        sid = jnp.pad(sid, ((0, pad), (0, 0)))
        qid = jnp.pad(qid, ((0, pad), (0, 0)))
        q = jnp.pad(q, ((0, pad), (0, 0)))

    grid = (B_pad // tile_b,)

    bytes_accessed = (_nbytes(q) + _nbytes(sid) + _nbytes(qid)
                      + _nbytes(table) + _nbytes(disc_row) + B_pad * 4)
    flops = (2 * B_pad * (S + Q) * K        # two-hot gather matmul
             + 2 * B_pad * K                # K-reduction
             + 2 * B_pad * (S + Q)          # discrimination gather
             + 4 * B_pad * K)               # elementwise
    cost = pl.CostEstimate(flops=flops, transcendentals=B_pad,
                           bytes_accessed=bytes_accessed)

    kernel = functools.partial(compute_if_kernel, n_students=S)

    out = pl.pallas_call(
        kernel,
        out_shape=jax.ShapeDtypeStruct((1, B_pad), jnp.float32),
        grid_spec=pltpu.PrefetchScalarGridSpec(
            num_scalar_prefetch=0,
            grid=grid,
            in_specs=[
                pl.BlockSpec((tile_b, 1), lambda i: (i, 0)),    # student ids
                pl.BlockSpec((tile_b, 1), lambda i: (i, 0)),    # question ids
                pl.BlockSpec((tile_b, K), lambda i: (i, 0)),    # q-matrix line
                pl.BlockSpec((S + Q, K), lambda i: (0, 0)),     # stacked sigmoided tables (VMEM-resident)
                pl.BlockSpec((1, S + Q), lambda i: (0, 0)),     # sigmoided discrimination row
            ],
            out_specs=pl.BlockSpec((1, tile_b), lambda i: (0, i)),
        ),
        compiler_params=pltpu.CompilerParams(
            dimension_semantics=("parallel",)),
        cost_estimate=cost,
    )(sid, qid, q, table, disc_row)

    return out.reshape(-1)[:B]   # .view(-1)


def xavier_normal(key, shape):
    fan_out, fan_in = shape  # nn.Embedding weight: (num_embeddings, embedding_dim)
    std = jnp.sqrt(2.0 / (fan_in + fan_out))
    return std * jax.random.normal(key, shape, dtype=jnp.float32)


if __name__ == "__main__":
    # Small, forward-consistent shapes.  batch is NOT a multiple of the tile so the
    # padding path is exercised; the tile-halving logic gives a 2-step grid.
    student_number = 20
    question_number = 15
    knowledge_number = 32
    batch = 200

    key = jax.random.PRNGKey(0)
    k_s, k_d, k_a, k_sid, k_qid, k_q = jax.random.split(key, 6)

    # Deterministic xavier_normal-initialized parameters (as in __init__).
    student_emb_w = xavier_normal(k_s, (student_number, knowledge_number))
    difficulty_w = xavier_normal(k_d, (question_number, knowledge_number))
    discrimination_w = xavier_normal(k_a, (question_number, 1))

    # Example inputs.  The q-matrix is binary, so bf16 is lossless and halves its
    # HBM traffic into the (bandwidth-bound) kernel.
    student_id = jax.random.randint(k_sid, (batch,), 0, student_number)
    question = jax.random.randint(k_qid, (batch,), 0, question_number)
    q_matrix_line = jax.random.bernoulli(
        k_q, p=0.5, shape=(batch, knowledge_number)).astype(jnp.bfloat16)

    out = compute_if_forward(student_emb_w, difficulty_w, discrimination_w,
                             student_id, question, q_matrix_line)
    out = jax.block_until_ready(out)

    # Pure-JAX reference (same interaction_func) for a sanity check.
    prof = jax.nn.sigmoid(student_emb_w[student_id])
    diff = jax.nn.sigmoid(difficulty_w[question])
    disc = jax.nn.sigmoid(discrimination_w[question])
    qf32 = q_matrix_line.astype(jnp.float32)
    ref = jax.nn.sigmoid(
        disc * jnp.sum((prof - diff) * qf32, axis=-1, keepdims=True)
    ).reshape(-1)

    assert out.shape == (batch,), out.shape
    # Tolerance: the chained f32 MXU gather + reduction round at ~1e-6..1e-5; the
    # failure mode being guarded against (bf16-downcast tables/logits, deliberately
    # avoided) would show up at ~1e-3, so 5e-5 still cleanly distinguishes it.
    assert jnp.allclose(out, ref, atol=5e-5, rtol=1e-5), (out, ref)
    print("KERNEL_OK")
</pallas_src>

<mosaic_0001>
module attributes {stable_mosaic.version = 11 : i64} {
  func.func @compute_if_kernel(%arg0: i32, %arg1: memref<128x1xi32, #tpu.memory_space<vmem>>, %arg2: memref<128x1xi32, #tpu.memory_space<vmem>>, %arg3: memref<128x32xbf16, #tpu.memory_space<vmem>>, %arg4: memref<35x32xf32, #tpu.memory_space<vmem>>, %arg5: memref<1x35xf32, #tpu.memory_space<vmem>>, %arg6: memref<1x128xf32, #tpu.memory_space<vmem>>) attributes {dimension_semantics = [#tpu.dimension_semantics<parallel>], iteration_bounds = array<i64: 2>, scalar_prefetch = 0 : i64, scratch_operands = 0 : i64, tpu.core_type = #tpu.core_type<tc>, window_params = [{transform_indices = @transform_0, window_bounds = array<i64: 128, 1>}, {transform_indices = @transform_1, window_bounds = array<i64: 128, 1>}, {transform_indices = @transform_2, window_bounds = array<i64: 128, 32>}, {pipeline_mode = #tpu.pipeline_mode<synchronous>, transform_indices = @transform_3, window_bounds = array<i64: 35, 32>}, {pipeline_mode = #tpu.pipeline_mode<synchronous>, transform_indices = @transform_4, window_bounds = array<i64: 1, 35>}, {transform_indices = @transform_5, window_bounds = array<i64: 1, 128>}]} {
    %c0 = arith.constant 0 : index
    %c0_0 = arith.constant 0 : index
    %0 = vector.load %arg1[%c0, %c0_0] : memref<128x1xi32, #tpu.memory_space<vmem>>, vector<128x1xi32>
    %c0_1 = arith.constant 0 : index
    %c0_2 = arith.constant 0 : index
    %1 = vector.load %arg2[%c0_1, %c0_2] : memref<128x1xi32, #tpu.memory_space<vmem>>, vector<128x1xi32>
    %c20_i32 = arith.constant 20 : i32
    %2 = vector.broadcast %c20_i32 : i32 to vector<128x1xi32>
    %3 = arith.addi %1, %2 : vector<128x1xi32>
    %4 = tpu.iota {dimensions = array<i32: 1>} : vector<128x35xi32>
    %5 = vector.broadcast %0 : vector<128x1xi32> to vector<128x35xi32>
    %6 = arith.cmpi eq, %4, %5 : vector<128x35xi32>
    %7 = arith.extui %6 : vector<128x35xi1> to vector<128x35xi32>
    %8 = arith.sitofp %7 : vector<128x35xi32> to vector<128x35xf32>
    %9 = vector.broadcast %3 : vector<128x1xi32> to vector<128x35xi32>
    %10 = arith.cmpi eq, %4, %9 : vector<128x35xi32>
    %11 = arith.extui %10 : vector<128x35xi1> to vector<128x35xi32>
    %12 = arith.sitofp %11 : vector<128x35xi32> to vector<128x35xf32>
    %13 = arith.addf %8, %12 : vector<128x35xf32>
    %c0_3 = arith.constant 0 : index
    %c0_4 = arith.constant 0 : index
    %14 = vector.load %arg4[%c0_3, %c0_4] : memref<35x32xf32, #tpu.memory_space<vmem>>, vector<35x32xf32>
    %cst = arith.constant dense<0.000000e+00> : vector<128x32xf32>
    %15 = tpu.matmul %13, %14, %cst {dimension_numbers = #tpu.dot_dimension_numbers<[1], [0], [0], [1], [0, 0, 1, 1], [], []>} : vector<128x35xf32>, vector<35x32xf32>, vector<128x32xf32> -> vector<128x32xf32>
    %c0_5 = arith.constant 0 : index
    %c0_6 = arith.constant 0 : index
    %16 = vector.load %arg3[%c0_5, %c0_6] : memref<128x32xbf16, #tpu.memory_space<vmem>>, vector<128x32xbf16>
    %17 = arith.extf %16 : vector<128x32xbf16> to vector<128x32xf32>
    %18 = arith.mulf %15, %17 : vector<128x32xf32>
    %cst_7 = arith.constant 1.000000e+00 : f32
    %19 = vector.broadcast %cst_7 : f32 to vector<1x32xf32>
    %cst_8 = arith.constant dense<0.000000e+00> : vector<1x128xf32>
    %20 = tpu.matmul %19, %18, %cst_8 {dimension_numbers = #tpu.dot_dimension_numbers<[1], [1], [0], [0], [0, 0, 1, 0], [], []>} : vector<1x32xf32>, vector<128x32xf32>, vector<1x128xf32> -> vector<1x128xf32>
    %c0_9 = arith.constant 0 : index
    %c0_10 = arith.constant 0 : index
    %21 = vector.load %arg5[%c0_9, %c0_10] : memref<1x35xf32, #tpu.memory_space<vmem>>, vector<1x35xf32>
    %cst_11 = arith.constant dense<0.000000e+00> : vector<1x128xf32>
    %22 = tpu.matmul %21, %13, %cst_11 {dimension_numbers = #tpu.dot_dimension_numbers<[1], [1], [0], [0], [0, 0, 1, 0], [], []>} : vector<1x35xf32>, vector<128x35xf32>, vector<1x128xf32> -> vector<1x128xf32>
    %23 = arith.mulf %22, %20 : vector<1x128xf32>
    %24 = arith.negf %23 : vector<1x128xf32>
    %25 = math.exp %24 : vector<1x128xf32>
    %cst_12 = arith.constant 1.000000e+00 : f32
    %26 = vector.broadcast %cst_12 : f32 to vector<1x128xf32>
    %27 = arith.addf %26, %25 : vector<1x128xf32>
    %28 = arith.divf %26, %27 : vector<1x128xf32>
    %c0_13 = arith.constant 0 : index
    %c0_14 = arith.constant 0 : index
    %29 = vector.load %arg6[%c0_13, %c0_14] : memref<1x128xf32, #tpu.memory_space<vmem>>, vector<1x128xf32>
    tpu.vector_store %arg6[%c0_13, %c0_14], %28 {strides = array<i32>} : memref<1x128xf32, #tpu.memory_space<vmem>>, vector<1x128xf32>,
    return
  }
  func.func @transform_0(%arg0: i32) -> (i32, i32) {
    %c0_i32 = arith.constant 0 : i32
    %c0_i32_0 = arith.constant 0 : i32
    return %arg0, %c0_i32 : i32, i32
  }
  func.func @transform_1(%arg0: i32) -> (i32, i32) {
    %c0_i32 = arith.constant 0 : i32
    %c0_i32_0 = arith.constant 0 : i32
    return %arg0, %c0_i32 : i32, i32
  }
  func.func @transform_2(%arg0: i32) -> (i32, i32) {
    %c0_i32 = arith.constant 0 : i32
    %c0_i32_0 = arith.constant 0 : i32
    return %arg0, %c0_i32 : i32, i32
  }
  func.func @transform_3(%arg0: i32) -> (i32, i32) {
    %c0_i32 = arith.constant 0 : i32
    %c0_i32_0 = arith.constant 0 : i32
    %c0_i32_1 = arith.constant 0 : i32
    return %c0_i32, %c0_i32_0 : i32, i32
  }
  func.func @transform_4(%arg0: i32) -> (i32, i32) {
    %c0_i32 = arith.constant 0 : i32
    %c0_i32_0 = arith.constant 0 : i32
    %c0_i32_1 = arith.constant 0 : i32
    return %c0_i32, %c0_i32_0 : i32, i32
  }
  func.func @transform_5(%arg0: i32) -> (i32, i32) {
    %c0_i32 = arith.constant 0 : i32
    %c0_i32_0 = arith.constant 0 : i32
    return %c0_i32, %arg0 : i32, i32
  }
}

</mosaic_0001>

<llo_original>
// kernel: tpu_custom_call.1
$region0: #{tpu_custom_call.1}
  #allocation0 [shape = 'u32[]', space=smem, size = 0x4, offset = 0x4, fixed_abs, tag = 'smem constant byte address 0x4 - core index']
  #allocation1 [shape = 'u32[144,128]{1,0:T(1,128)}', space=vmem, size = 0x12000, scoped, tag = 'internal scratch']
  %s0 = inlined_call_operand.vmem [shape: s32[256,1], index: 0, kind: input, shape index: {}]
  %s1 = inlined_call_operand.vmem [shape: s32[256,1], index: 1, kind: input, shape index: {}]
  %s2 = inlined_call_operand.vmem [shape: bf16[256,32], index: 2, kind: input, shape index: {}]
  %s3 = inlined_call_operand.vmem [shape: f32[35,32], index: 3, kind: input, shape index: {}]
  %s4 = inlined_call_operand.vmem [shape: f32[1,35], index: 4, kind: input, shape index: {}]
  %s5 = inlined_call_operand.hbm [shape: f32[1,256], index: 5, kind: output, shape index: {}]
  %s6 = sld [smem:[#allocation0]]
  $region53: #{tpu_custom_call.1} parent=0
    _
  %s8 = ssub.s32 1, %s6
  %s9 = scalar_select 0, %s8, %s6
  $region1: #{tpu_custom_call.1} parent=0
    #allocation2 [shape = 'u8[1024]{0}', space=vmem, size = 0x400, scoped, tag = 'output window, operand 0']
    #allocation3 [shape = 's32[2]{0}', space=sflag, size = 0x8, scoped, tag = 'scoped memory for tpu_custom_call.1']
    %10 = vsyncpa [#allocation3], 0
    %s11 = scalar_lea.sflag [#allocation3], 1
    %12 = vsyncpa %s11, 0
    loop: start=0, step=1, limit=4
    $region2: #{tpu_custom_call.1} parent=1 // loop_pre_header
      _
    $region3: #{tpu_custom_call.1} parent=1 // loop_header
      %s14 = sphi 0, %s18
      %p15 = scmp.ge.s32.totalorder %s14, 4
      %s24 = sphi 0, %s26
      %s27 = sphi 0, %s24
      %s28 = sphi 0, %s27
      %s44 = sphi 0, %s28
      %s50 = sphi 0, %s52
      %s53 = sphi 0, %s50
      %s54 = sphi 0, %s53
      %s70 = sphi 0, %s54
      %s76 = sphi 0, %s78
      %s79 = sphi 0, %s76
      %s80 = sphi 0, %s79
      %s96 = sphi 0, %s80
      %s100 = sphi 0, %s100
      %s102 = sphi 0, %s100
      %s103 = sphi 0, %s102
      %s117 = sphi 0, %s103
      %s121 = sphi 0, %s121
      %s123 = sphi 0, %s121
      %s124 = sphi 0, %s123
      %s138 = sphi 0, %s124
      %s144 = sphi 0, %s146
      %s147 = sphi 0, %s144
      %s148 = sphi 0, %s147
      %s164 = sphi 0, %s148
    $region4: #{tpu_custom_call.1} parent=1 // loop_header_branch
      %17 = sbr.rel (%p15) target = $region8
    $region5: #{tpu_custom_call.1} parent=1 // loop_body
      %s19 = ssub.s32 %s14, 1
      %s20 = ssub.s32 %s14, 2
      %s21 = sadd.s32 %s14, 1
      %s22 = ssub.s32 %s14, %s21
      %p23 = scmp.eq.s32.totalorder %s22, 0
      %s25 = sadd.s32 %s24, 1
      %s26 = scalar_select %p23, %s24, %s25
      %p29 = pneg %p23
      %p30 = scmp.eq.s32.totalorder %s14, 1
      %p31 = por %p29, %p30
      %p32 = scmp.ne.s32.totalorder %s24, %s27
      %p33 = scmp.eq.s32.totalorder %s14, 0
      %p34 = por %p32, %p33
      %p35 = scmp.ne.s32.totalorder %s24, %s27
      %p36 = scmp.eq.s32.totalorder %s19, 1
      %p37 = por %p35, %p36
      %p38 = scmp.ne.s32.totalorder %s27, %s28
      %p39 = scmp.eq.s32.totalorder %s19, 0
      %p40 = por %p38, %p39
      %p41 = scmp.ne.s32.totalorder %s27, %s28
      %p42 = scmp.eq.s32.totalorder %s20, 1
      %p43 = por %p41, %p42
      %p45 = scmp.ne.s32.totalorder %s28, %s44
      %p46 = scmp.eq.s32.totalorder %s20, 0
      %p47 = por %p45, %p46
      %s48 = ssub.s32 %s14, %s21
      %p49 = scmp.eq.s32.totalorder %s48, 0
      %s51 = sadd.s32 %s50, 1
      %s52 = scalar_select %p49, %s50, %s51
      %p55 = pneg %p49
      %p56 = scmp.eq.s32.totalorder %s14, 1
      %p57 = por %p55, %p56
      %p58 = scmp.ne.s32.totalorder %s50, %s53
      %p59 = scmp.eq.s32.totalorder %s14, 0
      %p60 = por %p58, %p59
      %p61 = scmp.ne.s32.totalorder %s50, %s53
      %p62 = scmp.eq.s32.totalorder %s19, 1
      %p63 = por %p61, %p62
      %p64 = scmp.ne.s32.totalorder %s53, %s54
      %p65 = scmp.eq.s32.totalorder %s19, 0
      %p66 = por %p64, %p65
      %p67 = scmp.ne.s32.totalorder %s53, %s54
      %p68 = scmp.eq.s32.totalorder %s20, 1
      %p69 = por %p67, %p68
      %p71 = scmp.ne.s32.totalorder %s54, %s70
      %p72 = scmp.eq.s32.totalorder %s20, 0
      %p73 = por %p71, %p72
      %s74 = ssub.s32 %s14, %s21
      %p75 = scmp.eq.s32.totalorder %s74, 0
      %s77 = sadd.s32 %s76, 1
      %s78 = scalar_select %p75, %s76, %s77
      %p81 = pneg %p75
      %p82 = scmp.eq.s32.totalorder %s14, 1
      %p83 = por %p81, %p82
      %p84 = scmp.ne.s32.totalorder %s76, %s79
      %p85 = scmp.eq.s32.totalorder %s14, 0
      %p86 = por %p84, %p85
      %p87 = scmp.ne.s32.totalorder %s76, %s79
      %p88 = scmp.eq.s32.totalorder %s19, 1
      %p89 = por %p87, %p88
      %p90 = scmp.ne.s32.totalorder %s79, %s80
      %p91 = scmp.eq.s32.totalorder %s19, 0
      %p92 = por %p90, %p91
      %p93 = scmp.ne.s32.totalorder %s79, %s80
      %p94 = scmp.eq.s32.totalorder %s20, 1
      %p95 = por %p93, %p94
      %p97 = scmp.ne.s32.totalorder %s80, %s96
      %p98 = scmp.eq.s32.totalorder %s20, 0
      %p99 = por %p97, %p98
      %s101 = sadd.s32 %s100, 1
      %p104 = scmp.eq.s32.totalorder %s14, 1
      %p105 = scmp.ne.s32.totalorder %s100, %s102
      %p106 = scmp.eq.s32.totalorder %s14, 0
      %p107 = por %p105, %p106
      %p108 = scmp.ne.s32.totalorder %s100, %s102
      %p109 = scmp.eq.s32.totalorder %s19, 1
      %p110 = por %p108, %p109
      %p111 = scmp.ne.s32.totalorder %s102, %s103
      %p112 = scmp.eq.s32.totalorder %s19, 0
      %p113 = por %p111, %p112
      %p114 = scmp.ne.s32.totalorder %s102, %s103
      %p115 = scmp.eq.s32.totalorder %s20, 1
      %p116 = por %p114, %p115
      %p118 = scmp.ne.s32.totalorder %s103, %s117
      %p119 = scmp.eq.s32.totalorder %s20, 0
      %p120 = por %p118, %p119
      %s122 = sadd.s32 %s121, 1
      %p125 = scmp.eq.s32.totalorder %s14, 1
      %p126 = scmp.ne.s32.totalorder %s121, %s123
      %p127 = scmp.eq.s32.totalorder %s14, 0
      %p128 = por %p126, %p127
      %p129 = scmp.ne.s32.totalorder %s121, %s123
      %p130 = scmp.eq.s32.totalorder %s19, 1
      %p131 = por %p129, %p130
      %p132 = scmp.ne.s32.totalorder %s123, %s124
      %p133 = scmp.eq.s32.totalorder %s19, 0
      %p134 = por %p132, %p133
      %p135 = scmp.ne.s32.totalorder %s123, %s124
      %p136 = scmp.eq.s32.totalorder %s20, 1
      %p137 = por %p135, %p136
      %p139 = scmp.ne.s32.totalorder %s124, %s138
      %p140 = scmp.eq.s32.totalorder %s20, 0
      %p141 = por %p139, %p140
      %s142 = ssub.s32 %s14, %s21
      %p143 = scmp.eq.s32.totalorder %s142, 0
      %s145 = sadd.s32 %s144, 1
      %s146 = scalar_select %p143, %s144, %s145
      %p149 = pneg %p143
      %p150 = scmp.eq.s32.totalorder %s14, 1
      %p151 = por %p149, %p150
      %p152 = scmp.ne.s32.totalorder %s144, %s147
      %p153 = scmp.eq.s32.totalorder %s14, 0
      %p154 = por %p152, %p153
      %p155 = scmp.ne.s32.totalorder %s144, %s147
      %p156 = scmp.eq.s32.totalorder %s19, 1
      %p157 = por %p155, %p156
      %p158 = scmp.ne.s32.totalorder %s147, %s148
      %p159 = scmp.eq.s32.totalorder %s19, 0
      %p160 = por %p158, %p159
      %p161 = scmp.ne.s32.totalorder %s147, %s148
      %p162 = scmp.eq.s32.totalorder %s20, 1
      %p163 = por %p161, %p162
      %p165 = scmp.ne.s32.totalorder %s148, %s164
      %p166 = scmp.eq.s32.totalorder %s20, 0
      %p167 = por %p165, %p166
      %p168 = scmp.le.s32.totalorder 1, %s14
      %p169 = scmp.lt.s32.totalorder %s14, 3
      %p170 = pnand %p168, %p169
      %p171 = pneg %p170
      // Predicated region
      $region9: #{tpu_custom_call.1} parent=5 // pred_check
        _
      $region10: #{tpu_custom_call.1} parent=5 // pred_check_branch
        %173 = sbr.rel (%p170) target = $region12
      $region11: #{tpu_custom_call.1} parent=5 // pred_region
        %s174 = ssub.s32 %s14, 1
        // Predicated region
        $region13: #{tpu_custom_call.1} parent=11 // pred_check
          %p175 = pneg %p113
        $region14: #{tpu_custom_call.1} parent=11 // pred_check_branch
          %177 = sbr.rel (%p175) target = $region16
        $region15: #{tpu_custom_call.1} parent=11 // pred_region
          _
        $region16: #{tpu_custom_call.1} parent=11 // pred_fallthru
          _
        // Predicated region
        $region17: #{tpu_custom_call.1} parent=11 // pred_check
          %p178 = pneg %p134
        $region18: #{tpu_custom_call.1} parent=11 // pred_check_branch
          %180 = sbr.rel (%p178) target = $region20
        $region19: #{tpu_custom_call.1} parent=11 // pred_region
          _
        $region20: #{tpu_custom_call.1} parent=11 // pred_fallthru
          _
      $region12: #{tpu_custom_call.1} parent=5 // pred_fallthru
        _
      %p181 = scmp.lt.s32.totalorder %s14, 2
      // Predicated region
      $region21: #{tpu_custom_call.1} parent=5 // pred_check
        %p182 = pneg %p181
      $region22: #{tpu_custom_call.1} parent=5 // pred_check_branch
        %184 = sbr.rel (%p182) target = $region24
      $region23: #{tpu_custom_call.1} parent=5 // pred_region
        // Predicated region
        $region25: #{tpu_custom_call.1} parent=23 // pred_check
          %p185 = pneg %p34
        $region26: #{tpu_custom_call.1} parent=23 // pred_check_branch
          %187 = sbr.rel (%p185) target = $region28
        $region27: #{tpu_custom_call.1} parent=23 // pred_region
          %s188 = smul.u32 16, %s14
          %p189 = scmp.lt.s32.totalorder %s188, 31
          %s190 = scalar_select %p189, %s188, 31
          %s191 = smul.addr %s190, 8
          %s192 = scalar_lea.vmem %s0, %s191
          %s193 = smul.u32 16, %s14
        $region28: #{tpu_custom_call.1} parent=23 // pred_fallthru
          _
        // Predicated region
        $region29: #{tpu_custom_call.1} parent=23 // pred_check
          %p194 = pneg %p60
        $region30: #{tpu_custom_call.1} parent=23 // pred_check_branch
          %196 = sbr.rel (%p194) target = $region32
        $region31: #{tpu_custom_call.1} parent=23 // pred_region
          %s197 = smul.u32 16, %s14
          %p198 = scmp.lt.s32.totalorder %s197, 31
          %s199 = scalar_select %p198, %s197, 31
          %s200 = smul.addr %s199, 8
          %s201 = scalar_lea.vmem %s1, %s200
          %s202 = smul.u32 16, %s14
        $region32: #{tpu_custom_call.1} parent=23 // pred_fallthru
          _
        // Predicated region
        $region33: #{tpu_custom_call.1} parent=23 // pred_check
          %p203 = pneg %p86
        $region34: #{tpu_custom_call.1} parent=23 // pred_check_branch
          %205 = sbr.rel (%p203) target = $region36
        $region35: #{tpu_custom_call.1} parent=23 // pred_region
          %s206 = smul.u32 16, %s14
          %p207 = scmp.lt.s32.totalorder %s206, 31
          %s208 = scalar_select %p207, %s206, 31
          %s209 = smul.addr %s208, 4
          %s210 = scalar_lea.vmem %s2, %s209
          %s211 = smul.u32 16, %s14
        $region36: #{tpu_custom_call.1} parent=23 // pred_fallthru
          _
      $region24: #{tpu_custom_call.1} parent=5 // pred_fallthru
        _
      %p212 = scmp.le.s32.totalorder 1, %s14
      %p213 = scmp.lt.s32.totalorder %s14, 3
      %p214 = pnand %p212, %p213
      %p215 = pneg %p214
      // Predicated region
      $region37: #{tpu_custom_call.1} parent=5 // pred_check
        _
      $region38: #{tpu_custom_call.1} parent=5 // pred_check_branch
        %217 = sbr.rel (%p214) target = $region40
      $region39: #{tpu_custom_call.1} parent=5 // pred_region
        %s218 = ssub.s32 %s14, 1
        %s219 = smul.u32 16, %s19
        %p220 = scmp.lt.s32.totalorder %s219, 31
        %s221 = scalar_select %p220, %s219, 31
        %s222 = smul.addr %s221, 8
        %s223 = scalar_lea.vmem %s0, %s222
        %p224 = pneg %p40
        %p225 = pneg %p37
        %s226 = smul.u32 16, %s19
        %p227 = scmp.lt.s32.totalorder %s226, 31
        %s228 = scalar_select %p227, %s226, 31
        %s229 = smul.addr %s228, 8
        %s230 = scalar_lea.vmem %s1, %s229
        %p231 = pneg %p66
        %p232 = pneg %p63
        %s233 = smul.u32 16, %s19
        %p234 = scmp.lt.s32.totalorder %s233, 31
        %s235 = scalar_select %p234, %s233, 31
        %s236 = smul.addr %s235, 4
        %s237 = scalar_lea.vmem %s2, %s236
        %p238 = pneg %p92
        %p239 = pneg %p89
        %p240 = pneg %p113
        %p241 = pneg %p110
        %p242 = pneg %p134
        %p243 = pneg %p131
        %p244 = pneg %p160
        %p245 = pneg %p157
        %s246 = sand.u32 %s147, 1
        %s247 = scalar_lea.sflag [#allocation3], %s246
        %s248 = sand.u32 %s147, 1
        %s249 = scalar_lea.vmem [#allocation2], %s248
        %s250 = smul.u32 16, %s19
        %p251 = scmp.lt.s32.totalorder %s250, 31
        %s252 = scalar_select %p251, %s250, 31
        %s253 = smul.addr %s252, 8
        %s254 = scalar_lea.vmem %s0, %s253
        %s255 = smul.u32 16, %s19
        %s256 = smul.u32 16, %s19
        %p257 = scmp.lt.s32.totalorder %s256, 31
        %s258 = scalar_select %p257, %s256, 31
        %s259 = smul.addr %s258, 8
        %s260 = scalar_lea.vmem %s1, %s259
        %s261 = smul.u32 16, %s19
        %s262 = smul.u32 16, %s19
        %p263 = scmp.lt.s32.totalorder %s262, 31
        %s264 = scalar_select %p263, %s262, 31
        %s265 = smul.addr %s264, 4
        %s266 = scalar_lea.vmem %s2, %s265
        %s267 = smul.u32 16, %s19
        %v268 = vld [vmem:[%s254] sm:$0xff]
        %v269 = vld [vmem:[%s254 + $0x8] sm:$0xff]
        %v270 = vld [vmem:[%s254 + $0x10] sm:$0xff]
        %v271 = vld [vmem:[%s254 + $0x18] sm:$0xff]
        %v272 = vld [vmem:[%s254 + $0x20] sm:$0xff]
        %v273 = vld [vmem:[%s254 + $0x28] sm:$0xff]
        %v274 = vld [vmem:[%s254 + $0x30] sm:$0xff]
        %v275 = vld [vmem:[%s254 + $0x38] sm:$0xff]
        %v276 = vld [vmem:[%s254 + $0x40] sm:$0xff]
        %v277 = vld [vmem:[%s254 + $0x48] sm:$0xff]
        %v278 = vld [vmem:[%s254 + $0x50] sm:$0xff]
        %v279 = vld [vmem:[%s254 + $0x58] sm:$0xff]
        %v280 = vld [vmem:[%s254 + $0x60] sm:$0xff]
        %v281 = vld [vmem:[%s254 + $0x68] sm:$0xff]
        %v282 = vld [vmem:[%s254 + $0x70] sm:$0xff]
        %v283 = vld [vmem:[%s254 + $0x78] sm:$0xff]
        %v284 = vld [vmem:[%s260] sm:$0xff]
        %v285 = vld [vmem:[%s260 + $0x8] sm:$0xff]
        %v286 = vld [vmem:[%s260 + $0x10] sm:$0xff]
        %v287 = vld [vmem:[%s260 + $0x18] sm:$0xff]
        %v288 = vld [vmem:[%s260 + $0x20] sm:$0xff]
        %v289 = vld [vmem:[%s260 + $0x28] sm:$0xff]
        %v290 = vld [vmem:[%s260 + $0x30] sm:$0xff]
        %v291 = vld [vmem:[%s260 + $0x38] sm:$0xff]
        %v292 = vld [vmem:[%s260 + $0x40] sm:$0xff]
        %v293 = vld [vmem:[%s260 + $0x48] sm:$0xff]
        %v294 = vld [vmem:[%s260 + $0x50] sm:$0xff]
        %v295 = vld [vmem:[%s260 + $0x58] sm:$0xff]
        %v296 = vld [vmem:[%s260 + $0x60] sm:$0xff]
        %v297 = vld [vmem:[%s260 + $0x68] sm:$0xff]
        %v298 = vld [vmem:[%s260 + $0x70] sm:$0xff]
        %v299 = vld [vmem:[%s260 + $0x78] sm:$0xff]
        %v300 = vadd.s32 %v284, 20
        %v301 = vadd.s32 %v285, 20
        %v302 = vadd.s32 %v286, 20
        %v303 = vadd.s32 %v287, 20
        %v304 = vadd.s32 %v288, 20
        %v305 = vadd.s32 %v289, 20
        %v306 = vadd.s32 %v290, 20
        %v307 = vadd.s32 %v291, 20
        %v308 = vadd.s32 %v292, 20
        %v309 = vadd.s32 %v293, 20
        %v310 = vadd.s32 %v294, 20
        %v311 = vadd.s32 %v295, 20
        %v312 = vadd.s32 %v296, 20
        %v313 = vadd.s32 %v297, 20
        %v314 = vadd.s32 %v298, 20
        %v315 = vadd.s32 %v299, 20
        %v316 = vlaneseq
        %v317 = vand.u32 %v316, 127
        %318 = vset.pattern.permute.xlu0 0
        %319 = vperm.xlu0 %318, %v268
        %v320 = vpop.permute.xlu0 %319
        %321 = vset.pattern.permute.xlu0 0
        %322 = vperm.xlu0 %321, %v269
        %v323 = vpop.permute.xlu0 %322
        %324 = vset.pattern.permute.xlu0 0
        %325 = vperm.xlu0 %324, %v270
        %v326 = vpop.permute.xlu0 %325
        %327 = vset.pattern.permute.xlu0 0
        %328 = vperm.xlu0 %327, %v271
        %v329 = vpop.permute.xlu0 %328
        %330 = vset.pattern.permute.xlu0 0
        %331 = vperm.xlu0 %330, %v272
        %v332 = vpop.permute.xlu0 %331
        %333 = vset.pattern.permute.xlu0 0
        %334 = vperm.xlu0 %333, %v273
        %v335 = vpop.permute.xlu0 %334
        %336 = vset.pattern.permute.xlu0 0
        %337 = vperm.xlu0 %336, %v274
        %v338 = vpop.permute.xlu0 %337
        %339 = vset.pattern.permute.xlu0 0
        %340 = vperm.xlu0 %339, %v275
        %v341 = vpop.permute.xlu0 %340
        %342 = vset.pattern.permute.xlu0 0
        %343 = vperm.xlu0 %342, %v276
        %v344 = vpop.permute.xlu0 %343
        %345 = vset.pattern.permute.xlu0 0
        %346 = vperm.xlu0 %345, %v277
        %v347 = vpop.permute.xlu0 %346
        %348 = vset.pattern.permute.xlu0 0
        %349 = vperm.xlu0 %348, %v278
        %v350 = vpop.permute.xlu0 %349
        %351 = vset.pattern.permute.xlu0 0
        %352 = vperm.xlu0 %351, %v279
        %v353 = vpop.permute.xlu0 %352
        %354 = vset.pattern.permute.xlu0 0
        %355 = vperm.xlu0 %354, %v280
        %v356 = vpop.permute.xlu0 %355
        %357 = vset.pattern.permute.xlu0 0
        %358 = vperm.xlu0 %357, %v281
        %v359 = vpop.permute.xlu0 %358
        %360 = vset.pattern.permute.xlu0 0
        %361 = vperm.xlu0 %360, %v282
        %v362 = vpop.permute.xlu0 %361
        %363 = vset.pattern.permute.xlu0 0
        %364 = vperm.xlu0 %363, %v283
        %v365 = vpop.permute.xlu0 %364
        %vm366 = vcmp.eq.s32.totalorder %v317, %v320
        %vm367 = vcmp.eq.s32.totalorder %v317, %v323
        %vm368 = vcmp.eq.s32.totalorder %v317, %v326
        %vm369 = vcmp.eq.s32.totalorder %v317, %v329
        %vm370 = vcmp.eq.s32.totalorder %v317, %v332
        %vm371 = vcmp.eq.s32.totalorder %v317, %v335
        %vm372 = vcmp.eq.s32.totalorder %v317, %v338
        %vm373 = vcmp.eq.s32.totalorder %v317, %v341
        %vm374 = vcmp.eq.s32.totalorder %v317, %v344
        %vm375 = vcmp.eq.s32.totalorder %v317, %v347
        %vm376 = vcmp.eq.s32.totalorder %v317, %v350
        %vm377 = vcmp.eq.s32.totalorder %v317, %v353
        %vm378 = vcmp.eq.s32.totalorder %v317, %v356
        %vm379 = vcmp.eq.s32.totalorder %v317, %v359
        %vm380 = vcmp.eq.s32.totalorder %v317, %v362
        %vm381 = vcmp.eq.s32.totalorder %v317, %v365
        %v382 = vsel %vm366, 1, 0
        %v383 = vsel %vm367, 1, 0
        %v384 = vsel %vm368, 1, 0
        %v385 = vsel %vm369, 1, 0
        %v386 = vsel %vm370, 1, 0
        %v387 = vsel %vm371, 1, 0
        %v388 = vsel %vm372, 1, 0
        %v389 = vsel %vm373, 1, 0
        %v390 = vsel %vm374, 1, 0
        %v391 = vsel %vm375, 1, 0
        %v392 = vsel %vm376, 1, 0
        %v393 = vsel %vm377, 1, 0
        %v394 = vsel %vm378, 1, 0
        %v395 = vsel %vm379, 1, 0
        %v396 = vsel %vm380, 1, 0
        %v397 = vsel %vm381, 1, 0
        %v398 = vcvt.s32.f32 %v382
        %v399 = vcvt.s32.f32 %v383
        %v400 = vcvt.s32.f32 %v384
        %v401 = vcvt.s32.f32 %v385
        %v402 = vcvt.s32.f32 %v386
        %v403 = vcvt.s32.f32 %v387
        %v404 = vcvt.s32.f32 %v388
        %v405 = vcvt.s32.f32 %v389
        %v406 = vcvt.s32.f32 %v390
        %v407 = vcvt.s32.f32 %v391
        %v408 = vcvt.s32.f32 %v392
        %v409 = vcvt.s32.f32 %v393
        %v410 = vcvt.s32.f32 %v394
        %v411 = vcvt.s32.f32 %v395
        %v412 = vcvt.s32.f32 %v396
        %v413 = vcvt.s32.f32 %v397
        %414 = vset.pattern.permute.xlu0 0
        %415 = vperm.xlu0 %414, %v300
        %v416 = vpop.permute.xlu0 %415
        %417 = vset.pattern.permute.xlu0 0
        %418 = vperm.xlu0 %417, %v301
        %v419 = vpop.permute.xlu0 %418
        %420 = vset.pattern.permute.xlu0 0
        %421 = vperm.xlu0 %420, %v302
        %v422 = vpop.permute.xlu0 %421
        %423 = vset.pattern.permute.xlu0 0
        %424 = vperm.xlu0 %423, %v303
        %v425 = vpop.permute.xlu0 %424
        %426 = vset.pattern.permute.xlu0 0
        %427 = vperm.xlu0 %426, %v304
        %v428 = vpop.permute.xlu0 %427
        %429 = vset.pattern.permute.xlu0 0
        %430 = vperm.xlu0 %429, %v305
        %v431 = vpop.permute.xlu0 %430
        %432 = vset.pattern.permute.xlu0 0
        %433 = vperm.xlu0 %432, %v306
        %v434 = vpop.permute.xlu0 %433
        %435 = vset.pattern.permute.xlu0 0
        %436 = vperm.xlu0 %435, %v307
        %v437 = vpop.permute.xlu0 %436
        %438 = vset.pattern.permute.xlu0 0
        %439 = vperm.xlu0 %438, %v308
        %v440 = vpop.permute.xlu0 %439
        %441 = vset.pattern.permute.xlu0 0
        %442 = vperm.xlu0 %441, %v309
        %v443 = vpop.permute.xlu0 %442
        %444 = vset.pattern.permute.xlu0 0
        %445 = vperm.xlu0 %444, %v310
        %v446 = vpop.permute.xlu0 %445
        %447 = vset.pattern.permute.xlu0 0
        %448 = vperm.xlu0 %447, %v311
        %v449 = vpop.permute.xlu0 %448
        %450 = vset.pattern.permute.xlu0 0
        %451 = vperm.xlu0 %450, %v312
        %v452 = vpop.permute.xlu0 %451
        %453 = vset.pattern.permute.xlu0 0
        %454 = vperm.xlu0 %453, %v313
        %v455 = vpop.permute.xlu0 %454
        %456 = vset.pattern.permute.xlu0 0
        %457 = vperm.xlu0 %456, %v314
        %v458 = vpop.permute.xlu0 %457
        %459 = vset.pattern.permute.xlu0 0
        %460 = vperm.xlu0 %459, %v315
        %v461 = vpop.permute.xlu0 %460
        %vm462 = vcmp.eq.s32.totalorder %v317, %v416
        %vm463 = vcmp.eq.s32.totalorder %v317, %v419
        %vm464 = vcmp.eq.s32.totalorder %v317, %v422
        %vm465 = vcmp.eq.s32.totalorder %v317, %v425
        %vm466 = vcmp.eq.s32.totalorder %v317, %v428
        %vm467 = vcmp.eq.s32.totalorder %v317, %v431
        %vm468 = vcmp.eq.s32.totalorder %v317, %v434
        %vm469 = vcmp.eq.s32.totalorder %v317, %v437
        %vm470 = vcmp.eq.s32.totalorder %v317, %v440
        %vm471 = vcmp.eq.s32.totalorder %v317, %v443
        %vm472 = vcmp.eq.s32.totalorder %v317, %v446
        %vm473 = vcmp.eq.s32.totalorder %v317, %v449
        %vm474 = vcmp.eq.s32.totalorder %v317, %v452
        %vm475 = vcmp.eq.s32.totalorder %v317, %v455
        %vm476 = vcmp.eq.s32.totalorder %v317, %v458
        %vm477 = vcmp.eq.s32.totalorder %v317, %v461
        %v478 = vsel %vm462, 1, 0
        %v479 = vsel %vm463, 1, 0
        %v480 = vsel %vm464, 1, 0
        %v481 = vsel %vm465, 1, 0
        %v482 = vsel %vm466, 1, 0
        %v483 = vsel %vm467, 1, 0
        %v484 = vsel %vm468, 1, 0
        %v485 = vsel %vm469, 1, 0
        %v486 = vsel %vm470, 1, 0
        %v487 = vsel %vm471, 1, 0
        %v488 = vsel %vm472, 1, 0
        %v489 = vsel %vm473, 1, 0
        %v490 = vsel %vm474, 1, 0
        %v491 = vsel %vm475, 1, 0
        %v492 = vsel %vm476, 1, 0
        %v493 = vsel %vm477, 1, 0
        %v494 = vcvt.s32.f32 %v478
        %v495 = vcvt.s32.f32 %v479
        %v496 = vcvt.s32.f32 %v480
        %v497 = vcvt.s32.f32 %v481
        %v498 = vcvt.s32.f32 %v482
        %v499 = vcvt.s32.f32 %v483
        %v500 = vcvt.s32.f32 %v484
        %v501 = vcvt.s32.f32 %v485
        %v502 = vcvt.s32.f32 %v486
        %v503 = vcvt.s32.f32 %v487
        %v504 = vcvt.s32.f32 %v488
        %v505 = vcvt.s32.f32 %v489
        %v506 = vcvt.s32.f32 %v490
        %v507 = vcvt.s32.f32 %v491
        %v508 = vcvt.s32.f32 %v492
        %v509 = vcvt.s32.f32 %v493
        %v510 = vadd.f32 %v398, %v494
        %v511 = vadd.f32 %v399, %v495
        %v512 = vadd.f32 %v400, %v496
        %v513 = vadd.f32 %v401, %v497
        %v514 = vadd.f32 %v402, %v498
        %v515 = vadd.f32 %v403, %v499
        %v516 = vadd.f32 %v404, %v500
        %v517 = vadd.f32 %v405, %v501
        %v518 = vadd.f32 %v406, %v502
        %v519 = vadd.f32 %v407, %v503
        %v520 = vadd.f32 %v408, %v504
        %v521 = vadd.f32 %v409, %v505
        %v522 = vadd.f32 %v410, %v506
        %v523 = vadd.f32 %v411, %v507
        %v524 = vadd.f32 %v412, %v508
        %v525 = vadd.f32 %v413, %v509
        %v526 = vld [vmem:[%s3] sm:$0xff]
        %v527 = vld [vmem:[%s3 + $0x8] sm:$0xff]
        %v528 = vld [vmem:[%s3 + $0x10] sm:$0xff]
        %v529 = vld [vmem:[%s3 + $0x18] sm:$0xff]
        %v530 = vld [vmem:[%s3 + $0x20] sm:$0x7]
        %vm531 = vcmask 285696
        %v533 = vsel %vm531, %v510, 0
        %v536 = vsel %vm531, %v511, 0
        %v539 = vsel %vm531, %v512, 0
        %v542 = vsel %vm531, %v513, 0
        %v545 = vsel %vm531, %v514, 0
        %v548 = vsel %vm531, %v515, 0
        %v551 = vsel %vm531, %v516, 0
        %v554 = vsel %vm531, %v517, 0
        %v557 = vsel %vm531, %v518, 0
        %v560 = vsel %vm531, %v519, 0
        %v563 = vsel %vm531, %v520, 0
        %v566 = vsel %vm531, %v521, 0
        %v569 = vsel %vm531, %v522, 0
        %v572 = vsel %vm531, %v523, 0
        %v575 = vsel %vm531, %v524, 0
        %v578 = vsel %vm531, %v525, 0
        %vm580 = vcmask 1042432
        %v582 = vsel %vm580, %v530, 0
        %584 = vmatprep.subr.mxu0 0.0
        %585 = vmatpush1.msra.mxu0 0.0
        %586 = vmatprep.subr.mxu0 0.0
        %587 = vmatpush1.msra.mxu0 0.0
        %588 = vmatprep.subr.mxu0 0.0
        %589 = vmatpush1.msra.mxu0 0.0
        %590 = vmatprep.subr.mxu0 0.0
        %591 = vmatpush1.msra.mxu0 0.0
        %592 = vmatprep.subr.mxu0 0.0
        %593 = vmatpush1.msra.mxu0 0.0
        %594 = vmatprep.subr.mxu0 0.0
        %595 = vmatpush1.msra.mxu0 0.0
        %596 = vmatprep.subr.mxu0 0.0
        %597 = vmatpush1.msra.mxu0 0.0
        %598 = vmatprep.subr.mxu0 0.0
        %599 = vmatpush1.msra.mxu0 0.0
        %600 = vmatprep.subr.mxu0 0.0
        %601 = vmatpush1.msra.mxu0 0.0
        %602 = vmatprep.subr.mxu0 0.0
        %603 = vmatpush1.msra.mxu0 0.0
        %604 = vmatprep.subr.mxu0 0.0
        %605 = vmatpush1.msra.mxu0 0.0
        %606 = vmatprep.subr.mxu0 0.0
        %607 = vmatpush1.msra.mxu0 %v582
        %608 = vmatprep.subr.mxu0 0.0
        %609 = vmatpush1.msra.mxu0 %v529
        %610 = vmatprep.subr.mxu0 0.0
        %611 = vmatpush1.msra.mxu0 %v528
        %612 = vmatprep.subr.mxu0 0.0
        %613 = vmatpush1.msra.mxu0 %v527
        %614 = vmatprep.subr.mxu0 0.0
        %615 = vmatpush1.msra.mxu0 %v526
        %616 = vmatprep.subr.mxu0 0.0
        %617 = vmatpush2.msra.mxu0 0.0
        %618 = vmatprep.subr.mxu0 0.0
        %619 = vmatpush2.msra.mxu0 0.0
        %620 = vmatprep.subr.mxu0 0.0
        %621 = vmatpush2.msra.mxu0 0.0
        %622 = vmatprep.subr.mxu0 0.0
        %623 = vmatpush2.msra.mxu0 0.0
        %624 = vmatprep.subr.mxu0 0.0
        %625 = vmatpush2.msra.mxu0 0.0
        %626 = vmatprep.subr.mxu0 0.0
        %627 = vmatpush2.msra.mxu0 0.0
        %628 = vmatprep.subr.mxu0 0.0
        %629 = vmatpush2.msra.mxu0 0.0
        %630 = vmatprep.subr.mxu0 0.0
        %631 = vmatpush2.msra.mxu0 0.0
        %632 = vmatprep.subr.mxu0 0.0
        %633 = vmatpush2.msra.mxu0 0.0
        %634 = vmatprep.subr.mxu0 0.0
        %635 = vmatpush2.msra.mxu0 0.0
        %636 = vmatprep.subr.mxu0 0.0
        %637 = vmatpush2.msra.mxu0 0.0
        %638 = vmatprep.subr.mxu0 0.0
        %639 = vmatpush2.msra.mxu0 0.0
        %640 = vmatprep.subr.mxu0 0.0
        %641 = vmatpush2.msra.mxu0 0.0
        %642 = vmatprep.subr.mxu0 0.0
        %643 = vmatpush2.msra.mxu0 0.0
        %644 = vmatprep.subr.mxu0 0.0
        %645 = vmatpush2.msra.mxu0 0.0
        %646 = vmatprep.subr.mxu0 0.0
        %647 = vmatpush2.msra.mxu0 0.0
        %648 = vmatprep.mubr.f32.mxu0 0.0
        %649 = vmatmul.mubr.f32.gmra.mxu0 %v533
        %v650 = vpop.f32.mrf.mxu0
        %v651 = vadd.f32 0.0, %v650
        %v652 = vpop.f32.mrf.mxu0
        %653 = vmatprep.mubr.f32.mxu0 0.0
        %654 = vmatmul.mubr.f32.gmra.mxu0 %v536
        %v655 = vpop.f32.mrf.mxu0
        %v656 = vadd.f32 0.0, %v655
        %v657 = vpop.f32.mrf.mxu0
        %658 = vmatprep.mubr.f32.mxu0 0.0
        %659 = vmatmul.mubr.f32.gmra.mxu0 %v539
        %v660 = vpop.f32.mrf.mxu0
        %v661 = vadd.f32 0.0, %v660
        %v662 = vpop.f32.mrf.mxu0
        %663 = vmatprep.mubr.f32.mxu0 0.0
        %664 = vmatmul.mubr.f32.gmra.mxu0 %v542
        %v665 = vpop.f32.mrf.mxu0
        %v666 = vadd.f32 0.0, %v665
        %v667 = vpop.f32.mrf.mxu0
        %668 = vmatprep.mubr.f32.mxu0 0.0
        %669 = vmatmul.mubr.f32.gmra.mxu0 %v545
        %v670 = vpop.f32.mrf.mxu0
        %v671 = vadd.f32 0.0, %v670
        %v672 = vpop.f32.mrf.mxu0
        %673 = vmatprep.mubr.f32.mxu0 0.0
        %674 = vmatmul.mubr.f32.gmra.mxu0 %v548
        %v675 = vpop.f32.mrf.mxu0
        %v676 = vadd.f32 0.0, %v675
        %v677 = vpop.f32.mrf.mxu0
        %678 = vmatprep.mubr.f32.mxu0 0.0
        %679 = vmatmul.mubr.f32.gmra.mxu0 %v551
        %v680 = vpop.f32.mrf.mxu0
        %v681 = vadd.f32 0.0, %v680
        %v682 = vpop.f32.mrf.mxu0
        %683 = vmatprep.mubr.f32.mxu0 0.0
        %684 = vmatmul.mubr.f32.gmra.mxu0 %v554
        %v685 = vpop.f32.mrf.mxu0
        %v686 = vadd.f32 0.0, %v685
        %v687 = vpop.f32.mrf.mxu0
        %688 = vmatprep.mubr.f32.mxu0 0.0
        %689 = vmatmul.mubr.f32.gmra.mxu0 %v557
        %v690 = vpop.f32.mrf.mxu0
        %v691 = vadd.f32 0.0, %v690
        %v692 = vpop.f32.mrf.mxu0
        %693 = vmatprep.mubr.f32.mxu0 0.0
        %694 = vmatmul.mubr.f32.gmra.mxu0 %v560
        %v695 = vpop.f32.mrf.mxu0
        %v696 = vadd.f32 0.0, %v695
        %v697 = vpop.f32.mrf.mxu0
        %698 = vmatprep.mubr.f32.mxu0 0.0
        %699 = vmatmul.mubr.f32.gmra.mxu0 %v563
        %v700 = vpop.f32.mrf.mxu0
        %v701 = vadd.f32 0.0, %v700
        %v702 = vpop.f32.mrf.mxu0
        %703 = vmatprep.mubr.f32.mxu0 0.0
        %704 = vmatmul.mubr.f32.gmra.mxu0 %v566
        %v705 = vpop.f32.mrf.mxu0
        %v706 = vadd.f32 0.0, %v705
        %v707 = vpop.f32.mrf.mxu0
        %708 = vmatprep.mubr.f32.mxu0 0.0
        %709 = vmatmul.mubr.f32.gmra.mxu0 %v569
        %v710 = vpop.f32.mrf.mxu0
        %v711 = vadd.f32 0.0, %v710
        %v712 = vpop.f32.mrf.mxu0
        %713 = vmatprep.mubr.f32.mxu0 0.0
        %714 = vmatmul.mubr.f32.gmra.mxu0 %v572
        %v715 = vpop.f32.mrf.mxu0
        %v716 = vadd.f32 0.0, %v715
        %v717 = vpop.f32.mrf.mxu0
        %718 = vmatprep.mubr.f32.mxu0 0.0
        %719 = vmatmul.mubr.f32.gmra.mxu0 %v575
        %v720 = vpop.f32.mrf.mxu0
        %v721 = vadd.f32 0.0, %v720
        %v722 = vpop.f32.mrf.mxu0
        %723 = vmatprep.mubr.f32.mxu0 0.0
        %724 = vmatmul.mubr.f32.gmra.mxu0 %v578
        %v725 = vpop.f32.mrf.mxu0
        %v726 = vadd.f32 0.0, %v725
        %v727 = vpop.f32.mrf.mxu0
        %728 = vdwg.mxu0
        %v729 = vld [vmem:[%s266] sm:$0xf]
        %v730 = vld [vmem:[%s266 + $0x4] sm:$0xf]
        %v731 = vld [vmem:[%s266 + $0x8] sm:$0xf]
        %v732 = vld [vmem:[%s266 + $0xc] sm:$0xf]
        %v733 = vld [vmem:[%s266 + $0x10] sm:$0xf]
        %v734 = vld [vmem:[%s266 + $0x14] sm:$0xf]
        %v735 = vld [vmem:[%s266 + $0x18] sm:$0xf]
        %v736 = vld [vmem:[%s266 + $0x1c] sm:$0xf]
        %v737 = vld [vmem:[%s266 + $0x20] sm:$0xf]
        %v738 = vld [vmem:[%s266 + $0x24] sm:$0xf]
        %v739 = vld [vmem:[%s266 + $0x28] sm:$0xf]
        %v740 = vld [vmem:[%s266 + $0x2c] sm:$0xf]
        %v741 = vld [vmem:[%s266 + $0x30] sm:$0xf]
        %v742 = vld [vmem:[%s266 + $0x34] sm:$0xf]
        %v743 = vld [vmem:[%s266 + $0x38] sm:$0xf]
        %v744 = vld [vmem:[%s266 + $0x3c] sm:$0xf]
        %v745 = vunpack.c.l.bf16 %v729
        %v746 = vunpack.c.l.bf16 %v730
        %v747 = vunpack.c.l.bf16 %v731
        %v748 = vunpack.c.l.bf16 %v732
        %v749 = vunpack.c.l.bf16 %v733
        %v750 = vunpack.c.l.bf16 %v734
        %v751 = vunpack.c.l.bf16 %v735
        %v752 = vunpack.c.l.bf16 %v736
        %v753 = vunpack.c.l.bf16 %v737
        %v754 = vunpack.c.l.bf16 %v738
        %v755 = vunpack.c.l.bf16 %v739
        %v756 = vunpack.c.l.bf16 %v740
        %v757 = vunpack.c.l.bf16 %v741
        %v758 = vunpack.c.l.bf16 %v742
        %v759 = vunpack.c.l.bf16 %v743
        %v760 = vunpack.c.l.bf16 %v744
        %v761 = vmul.f32 %v651, %v745
        %v762 = vmul.f32 %v656, %v746
        %v763 = vmul.f32 %v661, %v747
        %v764 = vmul.f32 %v666, %v748
        %v765 = vmul.f32 %v671, %v749
        %v766 = vmul.f32 %v676, %v750
        %v767 = vmul.f32 %v681, %v751
        %v768 = vmul.f32 %v686, %v752
        %v769 = vmul.f32 %v691, %v753
        %v770 = vmul.f32 %v696, %v754
        %v771 = vmul.f32 %v701, %v755
        %v772 = vmul.f32 %v706, %v756
        %v773 = vmul.f32 %v711, %v757
        %v774 = vmul.f32 %v716, %v758
        %v775 = vmul.f32 %v721, %v759
        %v776 = vmul.f32 %v726, %v760
        %vm777 = vcmask 261120
        %v779 = vsel %vm777, 1.0, 0
        %v782 = vsel %vm777, %v761, 0
        %v785 = vsel %vm777, %v762, 0
        %v788 = vsel %vm777, %v763, 0
        %v791 = vsel %vm777, %v764, 0
        %v794 = vsel %vm777, %v765, 0
        %v797 = vsel %vm777, %v766, 0
        %v800 = vsel %vm777, %v767, 0
        %v803 = vsel %vm777, %v768, 0
        %v806 = vsel %vm777, %v769, 0
        %v809 = vsel %vm777, %v770, 0
        %v812 = vsel %vm777, %v771, 0
        %v815 = vsel %vm777, %v772, 0
        %v818 = vsel %vm777, %v773, 0
        %v821 = vsel %vm777, %v774, 0
        %v824 = vsel %vm777, %v775, 0
        %v827 = vsel %vm777, %v776, 0
        %829 = vmatprep.subr.mxu0 0.0
        %830 = vmatpush1.xpose.msra.mxu0 %v827
        %831 = vmatprep.subr.mxu0 0.0
        %832 = vmatpush1.xpose.msra.mxu0 %v824
        %833 = vmatprep.subr.mxu0 0.0
        %834 = vmatpush1.xpose.msra.mxu0 %v821
        %835 = vmatprep.subr.mxu0 0.0
        %836 = vmatpush1.xpose.msra.mxu0 %v818
        %837 = vmatprep.subr.mxu0 0.0
        %838 = vmatpush1.xpose.msra.mxu0 %v815
        %839 = vmatprep.subr.mxu0 0.0
        %840 = vmatpush1.xpose.msra.mxu0 %v812
        %841 = vmatprep.subr.mxu0 0.0
        %842 = vmatpush1.xpose.msra.mxu0 %v809
        %843 = vmatprep.subr.mxu0 0.0
        %844 = vmatpush1.xpose.msra.mxu0 %v806
        %845 = vmatprep.subr.mxu0 0.0
        %846 = vmatpush1.xpose.msra.mxu0 %v803
        %847 = vmatprep.subr.mxu0 0.0
        %848 = vmatpush1.xpose.msra.mxu0 %v800
        %849 = vmatprep.subr.mxu0 0.0
        %850 = vmatpush1.xpose.msra.mxu0 %v797
        %851 = vmatprep.subr.mxu0 0.0
        %852 = vmatpush1.xpose.msra.mxu0 %v794
        %853 = vmatprep.subr.mxu0 0.0
        %854 = vmatpush1.xpose.msra.mxu0 %v791
        %855 = vmatprep.subr.mxu0 0.0
        %856 = vmatpush1.xpose.msra.mxu0 %v788
        %857 = vmatprep.subr.mxu0 0.0
        %858 = vmatpush1.xpose.msra.mxu0 %v785
        %859 = vmatprep.subr.mxu0 0.0
        %860 = vmatpush1.xpose.msra.mxu0 %v782
        %861 = vmatprep.subr.mxu0 0.0
        %862 = vmatpush2.xpose.msra.mxu0 0.0
        %863 = vmatprep.subr.mxu0 0.0
        %864 = vmatpush2.xpose.msra.mxu0 0.0
        %865 = vmatprep.subr.mxu0 0.0
        %866 = vmatpush2.xpose.msra.mxu0 0.0
        %867 = vmatprep.subr.mxu0 0.0
        %868 = vmatpush2.xpose.msra.mxu0 0.0
        %869 = vmatprep.subr.mxu0 0.0
        %870 = vmatpush2.xpose.msra.mxu0 0.0
        %871 = vmatprep.subr.mxu0 0.0
        %872 = vmatpush2.xpose.msra.mxu0 0.0
        %873 = vmatprep.subr.mxu0 0.0
        %874 = vmatpush2.xpose.msra.mxu0 0.0
        %875 = vmatprep.subr.mxu0 0.0
        %876 = vmatpush2.xpose.msra.mxu0 0.0
        %877 = vmatprep.subr.mxu0 0.0
        %878 = vmatpush2.xpose.msra.mxu0 0.0
        %879 = vmatprep.subr.mxu0 0.0
        %880 = vmatpush2.xpose.msra.mxu0 0.0
        %881 = vmatprep.subr.mxu0 0.0
        %882 = vmatpush2.xpose.msra.mxu0 0.0
        %883 = vmatprep.subr.mxu0 0.0
        %884 = vmatpush2.xpose.msra.mxu0 0.0
        %885 = vmatprep.subr.mxu0 0.0
        %886 = vmatpush2.xpose.msra.mxu0 0.0
        %887 = vmatprep.subr.mxu0 0.0
        %888 = vmatpush2.xpose.msra.mxu0 0.0
        %889 = vmatprep.subr.mxu0 0.0
        %890 = vmatpush2.xpose.msra.mxu0 0.0
        %891 = vmatprep.subr.mxu0 0.0
        %892 = vmatpush2.xpose.msra.mxu0 0.0
        %893 = vmatprep.mubr.f32.mxu0 0.0
        %894 = vmatmul.mubr.f32.gmra.mxu0 %v779
        %v895 = vpop.f32.mrf.mxu0
        %v896 = vadd.f32 0.0, %v895
        %v897 = vpop.f32.mrf.mxu0
        %898 = vdwg.mxu0
        %v899 = vld [vmem:[%s4] sm:$0x1]
        %v901 = vsel %vm531, %v899, 0
        %903 = vmatprep.subr.mxu0 0.0
        %904 = vmatpush1.xpose.msra.mxu0 %v578
        %905 = vmatprep.subr.mxu0 0.0
        %906 = vmatpush1.xpose.msra.mxu0 %v575
        %907 = vmatprep.subr.mxu0 0.0
        %908 = vmatpush1.xpose.msra.mxu0 %v572
        %909 = vmatprep.subr.mxu0 0.0
        %910 = vmatpush1.xpose.msra.mxu0 %v569
        %911 = vmatprep.subr.mxu0 0.0
        %912 = vmatpush1.xpose.msra.mxu0 %v566
        %913 = vmatprep.subr.mxu0 0.0
        %914 = vmatpush1.xpose.msra.mxu0 %v563
        %915 = vmatprep.subr.mxu0 0.0
        %916 = vmatpush1.xpose.msra.mxu0 %v560
        %917 = vmatprep.subr.mxu0 0.0
        %918 = vmatpush1.xpose.msra.mxu0 %v557
        %919 = vmatprep.subr.mxu0 0.0
        %920 = vmatpush1.xpose.msra.mxu0 %v554
        %921 = vmatprep.subr.mxu0 0.0
        %922 = vmatpush1.xpose.msra.mxu0 %v551
        %923 = vmatprep.subr.mxu0 0.0
        %924 = vmatpush1.xpose.msra.mxu0 %v548
        %925 = vmatprep.subr.mxu0 0.0
        %926 = vmatpush1.xpose.msra.mxu0 %v545
        %927 = vmatprep.subr.mxu0 0.0
        %928 = vmatpush1.xpose.msra.mxu0 %v542
        %929 = vmatprep.subr.mxu0 0.0
        %930 = vmatpush1.xpose.msra.mxu0 %v539
        %931 = vmatprep.subr.mxu0 0.0
        %932 = vmatpush1.xpose.msra.mxu0 %v536
        %933 = vmatprep.subr.mxu0 0.0
        %934 = vmatpush1.xpose.msra.mxu0 %v533
        %935 = vmatprep.subr.mxu0 0.0
        %936 = vmatpush2.xpose.msra.mxu0 0.0
        %937 = vmatprep.subr.mxu0 0.0
        %938 = vmatpush2.xpose.msra.mxu0 0.0
        %939 = vmatprep.subr.mxu0 0.0
        %940 = vmatpush2.xpose.msra.mxu0 0.0
        %941 = vmatprep.subr.mxu0 0.0
        %942 = vmatpush2.xpose.msra.mxu0 0.0
        %943 = vmatprep.subr.mxu0 0.0
        %944 = vmatpush2.xpose.msra.mxu0 0.0
        %945 = vmatprep.subr.mxu0 0.0
        %946 = vmatpush2.xpose.msra.mxu0 0.0
        %947 = vmatprep.subr.mxu0 0.0
        %948 = vmatpush2.xpose.msra.mxu0 0.0
        %949 = vmatprep.subr.mxu0 0.0
        %950 = vmatpush2.xpose.msra.mxu0 0.0
        %951 = vmatprep.subr.mxu0 0.0
        %952 = vmatpush2.xpose.msra.mxu0 0.0
        %953 = vmatprep.subr.mxu0 0.0
        %954 = vmatpush2.xpose.msra.mxu0 0.0
        %955 = vmatprep.subr.mxu0 0.0
        %956 = vmatpush2.xpose.msra.mxu0 0.0
        %957 = vmatprep.subr.mxu0 0.0
        %958 = vmatpush2.xpose.msra.mxu0 0.0
        %959 = vmatprep.subr.mxu0 0.0
        %960 = vmatpush2.xpose.msra.mxu0 0.0
        %961 = vmatprep.subr.mxu0 0.0
        %962 = vmatpush2.xpose.msra.mxu0 0.0
        %963 = vmatprep.subr.mxu0 0.0
        %964 = vmatpush2.xpose.msra.mxu0 0.0
        %965 = vmatprep.subr.mxu0 0.0
        %966 = vmatpush2.xpose.msra.mxu0 0.0
        %967 = vmatprep.mubr.f32.mxu0 0.0
        %968 = vmatmul.mubr.f32.gmra.mxu0 %v901
        %v969 = vpop.f32.mrf.mxu0
        %v970 = vadd.f32 0.0, %v969
        %v971 = vpop.f32.mrf.mxu0
        %972 = vdwg.mxu0
        %v973 = vmul.f32 %v970, %v896
        %v974 = vxor.u32 %v973, 2147483648
        %v975 = vmul.f32 %v974, 1.442695
        %v976 = vpow.pop %v975
        %v977 = vadd.f32 %v976, 1.0
        %v978 = vrcp.pop %v977
        %v979 = vmul.f32 1.0, %v978
        %980 = vst [vmem:[%s249] sm:$0x1] %v979
        %s981 = sand.u32 %s147, 1
        %s982 = scalar_lea.sflag [#allocation3], %s981
        %s983 = sand.u32 %s147, 1
        %s984 = scalar_lea.vmem [#allocation2], %s983
        // Predicated region
        $region41: #{tpu_custom_call.1} parent=39 // pred_check
          %p985 = pneg %p157
        $region42: #{tpu_custom_call.1} parent=39 // pred_check_branch
          %987 = sbr.rel (%p985) target = $region44
        $region43: #{tpu_custom_call.1} parent=39 // pred_region
          %s989 = ssub.s32 16, 16
          %990 = vsyncadd %s982, %s989
          %s991 = smul.addr %s19, 16
          %s992 = scalar_lea.hbm %s5, %s991
          %s994 = sshll.u32 %s984, 4
          %s995 = int_to_ptr.vmem [resolvable:$true] %s994
          %997 = dma.vmem_to_hbm [thread:$0]  %s995, 16, %s992, %s982
        $region44: #{tpu_custom_call.1} parent=39 // pred_fallthru
          _
      $region40: #{tpu_custom_call.1} parent=5 // pred_fallthru
        _
      %p998 = scmp.le.s32.totalorder 2, %s14
      // Predicated region
      $region45: #{tpu_custom_call.1} parent=5 // pred_check
        %p999 = pneg %p998
      $region46: #{tpu_custom_call.1} parent=5 // pred_check_branch
        %1001 = sbr.rel (%p999) target = $region48
      $region47: #{tpu_custom_call.1} parent=5 // pred_region
        %s1002 = ssub.s32 %s14, 2
        // Predicated region
        $region49: #{tpu_custom_call.1} parent=47 // pred_check
          %p1003 = pneg %p163
        $region50: #{tpu_custom_call.1} parent=47 // pred_check_branch
          %1005 = sbr.rel (%p1003) target = $region52
        $region51: #{tpu_custom_call.1} parent=47 // pred_region
          %s1006 = sand.u32 %s148, 1
          %s1007 = scalar_lea.sflag [#allocation3], %s1006
          %s1008 = sand.u32 %s148, 1
          %s1009 = scalar_lea.vmem [#allocation2], %s1008
          %1010 = dma.done %s1007, 16
        $region52: #{tpu_custom_call.1} parent=47 // pred_fallthru
          _
      $region48: #{tpu_custom_call.1} parent=5 // pred_fallthru
        _
    $region6: #{tpu_custom_call.1} parent=1 // loop_footer
      %s18 = sadd.s32 1, %s14
    $region7: #{tpu_custom_call.1} parent=1 // loop_footer_branch
      %13 = sbr.rel target = $region3
    $region8: #{tpu_custom_call.1} parent=1 // loop_exit
      _
    %1011 = vsyncpa [#allocation3], 1
    %s1012 = scalar_lea.sflag [#allocation3], 1
    %1013 = vsyncpa %s1012, 1

</llo_original>
